<compile_context>
chip_gen: v7x
topology: tpu7x:2x2x1
jax: 0.10.0
libtpu: 0.0.40
codegen_flags: <defaults>
</compile_context>

<pallas_src>
import jax
import jax.numpy as jnp
import numpy as np
from jax.experimental import pallas as pl
from jax.experimental.pallas import tpu as pltpu


def _round_up(x, m):
    return (x + m - 1) // m * m


def critic_kernel(x_ref, w1t_ref, b1_ref, w2t_ref, b2_ref, w3t_ref, b3_ref, o_ref):
    # x arrives in natural (TB, S) layout; layer 1 contracts both operands on
    # their last axis (A @ B^T), flipping to feature-major on-chip so every
    # later intermediate and the output store are lane-dense in the batch dim.
    h1 = jax.lax.dot_general(
        w1t_ref[...], x_ref[...],
        dimension_numbers=(((1,), (1,)), ((), ())),
        preferred_element_type=jnp.float32)                       # (H1, TB)
    h1 = jnp.maximum(h1 + b1_ref[...], 0.0)

    h2 = jnp.dot(w2t_ref[...], h1.astype(w2t_ref.dtype),
                 preferred_element_type=jnp.float32)              # (H2, TB)
    h2 = jnp.maximum(h2 + b2_ref[...], 0.0)

    v = jnp.dot(w3t_ref[...], h2.astype(w3t_ref.dtype),
                preferred_element_type=jnp.float32)               # (L,  TB)
    o_ref[...] = (v + b3_ref[...]).astype(o_ref.dtype)


def critic_forward(s, params, *, block_batch=8192, compute_dtype=jnp.float32):
    """s: (batch, state_dim); params in PyTorch-equivalent (in, out) layout."""
    w1, b1, w2, b2, w3, b3 = params
    batch, state_dim = s.shape
    hidden1 = w1.shape[1]
    hidden2 = w2.shape[1]
    last_size = w3.shape[1]

    # Batch tile: multiple of 128 (lane-dense output stores), as large as
    # possible to amortize per-step pipeline overhead.  If the whole batch
    # would fit into one grid step, split it so >=2 steps exist and v7x's two
    # TensorCores can share the "parallel" batch axis.
    tb = min(block_batch, _round_up(batch, 128))
    tb = max(128, _round_up(tb, 128))
    if pl.cdiv(batch, tb) < 2 and batch > 128:
        tb = _round_up(pl.cdiv(batch, 2), 128)
    num_tiles = pl.cdiv(batch, tb)

    # No HBM-side pad/transpose of x; only dtype casts (no-op for f32 default).
    x = s.astype(compute_dtype)                              # (batch, S)
    w1t = w1.T.astype(compute_dtype)                         # (H1, S)
    w2t = w2.T.astype(compute_dtype)                         # (H2, H1)
    w3t = w3.T.astype(compute_dtype)                         # (L,  H2)
    b1t = b1.reshape(hidden1, 1).astype(jnp.float32)
    b2t = b2.reshape(hidden2, 1).astype(jnp.float32)
    b3t = b3.reshape(last_size, 1).astype(jnp.float32)

    def resident(arr):  # whole array in VMEM, same block every grid step
        return pl.BlockSpec(arr.shape, lambda i: (0, 0))

    out_t = pl.pallas_call(
        critic_kernel,
        out_shape=jax.ShapeDtypeStruct((last_size, batch), jnp.float32),
        grid=(num_tiles,),
        in_specs=[
            pl.BlockSpec((tb, state_dim), lambda i: (i, 0)),  # x tile, pipelined
            resident(w1t), resident(b1t),
            resident(w2t), resident(b2t),
            resident(w3t), resident(b3t),
        ],
        out_specs=pl.BlockSpec((last_size, tb), lambda i: (0, i)),
        compiler_params=pltpu.CompilerParams(
            dimension_semantics=("parallel",)),
    )(x, w1t, b1t, w2t, b2t, w3t, b3t)

    return out_t.T  # (batch, last_size)


def make_params(key, state_dim, hidden, last_size):
    """Deterministic synthetic parameter init (no checkpoint loading)."""
    k1, k2, k3, k4, k5, k6 = jax.random.split(key, 6)
    scale1 = 1.0 / np.sqrt(state_dim)
    scale2 = 1.0 / np.sqrt(hidden)
    w1 = jax.random.normal(k1, (state_dim, hidden), jnp.float32) * scale1
    b1 = jax.random.normal(k2, (1, hidden), jnp.float32) * 0.01
    w2 = jax.random.normal(k3, (hidden, hidden), jnp.float32) * scale2
    b2 = jax.random.normal(k4, (1, hidden), jnp.float32) * 0.01
    w3 = jax.random.normal(k5, (hidden, last_size), jnp.float32) * scale2
    b3 = jax.random.normal(k6, (1, last_size), jnp.float32) * 0.01
    return (w1, b1, w2, b2, w3, b3)


def critic_reference(s, params):
    """Pure-JAX reference for the same forward pass."""
    w1, b1, w2, b2, w3, b3 = params
    h1 = jnp.maximum(s @ w1 + b1, 0.0)
    h2 = jnp.maximum(h1 @ w2 + b2, 0.0)
    return h2 @ w3 + b3


if __name__ == "__main__":
    # TODO(synk): the original forward forwards kwargs['state'] (recurrent hidden
    # state) to preprocess_net; for the default feedforward Net it is unused, so
    # it is not modeled here.
    batch = 600        # non-multiple of 128: exercises the ragged (masked) edge tile
    state_dim = 16     # flattened observation dim
    hidden = 32        # preprocess_net output_dim
    last_size = 1      # Critic default: single V(s) value

    key = jax.random.PRNGKey(0)
    k_x, k_p = jax.random.split(key)
    s = jax.random.normal(k_x, (batch, state_dim), jnp.float32)
    params = make_params(k_p, state_dim, hidden, last_size)
    ref = critic_reference(s, params)

    # Small explicit tile: multi-step grid (3 tiles of 256) + ragged edge tile.
    out = jax.block_until_ready(critic_forward(s, params, block_batch=256))
    assert out.shape == (batch, last_size)
    np.testing.assert_allclose(np.asarray(out), np.asarray(ref), rtol=1e-4, atol=1e-4)

    # Default (large) tile: exercises the ">=2 grid steps" split for v7x megacore.
    out_big = jax.block_until_ready(critic_forward(s, params))
    np.testing.assert_allclose(np.asarray(out_big), np.asarray(ref), rtol=1e-4, atol=1e-4)

    # bf16 MXU path (halves x DMA bytes; f32 accumulation; looser parity tol).
    out_bf16 = jax.block_until_ready(
        critic_forward(s, params, compute_dtype=jnp.bfloat16))
    np.testing.assert_allclose(np.asarray(out_bf16), np.asarray(ref),
                               rtol=2e-2, atol=2e-2)

    print("KERNEL_OK")
</pallas_src>

<mosaic_0001>
module attributes {stable_mosaic.version = 11 : i64} {
  func.func @critic_kernel(%arg0: i32, %arg1: memref<256x16xf32, #tpu.memory_space<vmem>>, %arg2: memref<32x16xf32, #tpu.memory_space<vmem>>, %arg3: memref<32x1xf32, #tpu.memory_space<vmem>>, %arg4: memref<32x32xf32, #tpu.memory_space<vmem>>, %arg5: memref<32x1xf32, #tpu.memory_space<vmem>>, %arg6: memref<1x32xf32, #tpu.memory_space<vmem>>, %arg7: memref<1x1xf32, #tpu.memory_space<vmem>>, %arg8: memref<1x256xf32, #tpu.memory_space<vmem>>) attributes {dimension_semantics = [#tpu.dimension_semantics<parallel>], iteration_bounds = array<i64: 3>, scalar_prefetch = 0 : i64, scratch_operands = 0 : i64, tpu.core_type = #tpu.core_type<tc>, window_params = [{transform_indices = @transform_0, window_bounds = array<i64: 256, 16>}, {pipeline_mode = #tpu.pipeline_mode<synchronous>, transform_indices = @transform_1, window_bounds = array<i64: 32, 16>}, {pipeline_mode = #tpu.pipeline_mode<synchronous>, transform_indices = @transform_2, window_bounds = array<i64: 32, 1>}, {pipeline_mode = #tpu.pipeline_mode<synchronous>, transform_indices = @transform_3, window_bounds = array<i64: 32, 32>}, {pipeline_mode = #tpu.pipeline_mode<synchronous>, transform_indices = @transform_4, window_bounds = array<i64: 32, 1>}, {pipeline_mode = #tpu.pipeline_mode<synchronous>, transform_indices = @transform_5, window_bounds = array<i64: 1, 32>}, {pipeline_mode = #tpu.pipeline_mode<synchronous>, transform_indices = @transform_6, window_bounds = array<i64: 1, 1>}, {transform_indices = @transform_7, window_bounds = array<i64: 1, 256>}]} {
    %c0 = arith.constant 0 : index
    %c0_0 = arith.constant 0 : index
    %0 = vector.load %arg2[%c0, %c0_0] : memref<32x16xf32, #tpu.memory_space<vmem>>, vector<32x16xf32>
    %c0_1 = arith.constant 0 : index
    %c0_2 = arith.constant 0 : index
    %1 = vector.load %arg1[%c0_1, %c0_2] : memref<256x16xf32, #tpu.memory_space<vmem>>, vector<256x16xf32>
    %cst = arith.constant dense<0.000000e+00> : vector<32x256xf32>
    %2 = tpu.matmul %0, %1, %cst {dimension_numbers = #tpu.dot_dimension_numbers<[1], [1], [0], [0], [0, 0, 1, 0], [], []>} : vector<32x16xf32>, vector<256x16xf32>, vector<32x256xf32> -> vector<32x256xf32>
    %c0_3 = arith.constant 0 : index
    %c0_4 = arith.constant 0 : index
    %3 = vector.load %arg3[%c0_3, %c0_4] : memref<32x1xf32, #tpu.memory_space<vmem>>, vector<32x1xf32>
    %4 = vector.broadcast %3 : vector<32x1xf32> to vector<32x256xf32>
    %5 = arith.addf %2, %4 : vector<32x256xf32>
    %cst_5 = arith.constant 0.000000e+00 : f32
    %6 = vector.broadcast %cst_5 : f32 to vector<32x256xf32>
    %7 = arith.maximumf %5, %6 : vector<32x256xf32>
    %c0_6 = arith.constant 0 : index
    %c0_7 = arith.constant 0 : index
    %8 = vector.load %arg4[%c0_6, %c0_7] : memref<32x32xf32, #tpu.memory_space<vmem>>, vector<32x32xf32>
    %cst_8 = arith.constant dense<0.000000e+00> : vector<32x256xf32>
    %9 = tpu.matmul %8, %7, %cst_8 {dimension_numbers = #tpu.dot_dimension_numbers<[1], [0], [0], [1], [0, 0, 1, 1], [], []>} : vector<32x32xf32>, vector<32x256xf32>, vector<32x256xf32> -> vector<32x256xf32>
    %c0_9 = arith.constant 0 : index
    %c0_10 = arith.constant 0 : index
    %10 = vector.load %arg5[%c0_9, %c0_10] : memref<32x1xf32, #tpu.memory_space<vmem>>, vector<32x1xf32>
    %11 = vector.broadcast %10 : vector<32x1xf32> to vector<32x256xf32>
    %12 = arith.addf %9, %11 : vector<32x256xf32>
    %cst_11 = arith.constant 0.000000e+00 : f32
    %13 = vector.broadcast %cst_11 : f32 to vector<32x256xf32>
    %14 = arith.maximumf %12, %13 : vector<32x256xf32>
    %c0_12 = arith.constant 0 : index
    %c0_13 = arith.constant 0 : index
    %15 = vector.load %arg6[%c0_12, %c0_13] : memref<1x32xf32, #tpu.memory_space<vmem>>, vector<1x32xf32>
    %cst_14 = arith.constant dense<0.000000e+00> : vector<1x256xf32>
    %16 = tpu.matmul %15, %14, %cst_14 {dimension_numbers = #tpu.dot_dimension_numbers<[1], [0], [0], [1], [0, 0, 1, 1], [], []>} : vector<1x32xf32>, vector<32x256xf32>, vector<1x256xf32> -> vector<1x256xf32>
    %c0_15 = arith.constant 0 : index
    %c0_16 = arith.constant 0 : index
    %17 = vector.load %arg7[%c0_15, %c0_16] : memref<1x1xf32, #tpu.memory_space<vmem>>, vector<1x1xf32>
    %18 = vector.broadcast %17 : vector<1x1xf32> to vector<1x256xf32>
    %19 = arith.addf %16, %18 : vector<1x256xf32>
    %c0_17 = arith.constant 0 : index
    %c0_18 = arith.constant 0 : index
    %20 = vector.load %arg8[%c0_17, %c0_18] : memref<1x256xf32, #tpu.memory_space<vmem>>, vector<1x256xf32>
    tpu.vector_store %arg8[%c0_17, %c0_18], %19 {strides = array<i32>} : memref<1x256xf32, #tpu.memory_space<vmem>>, vector<1x256xf32>,
    return
  }
  func.func @transform_0(%arg0: i32) -> (i32, i32) {
    %c0_i32 = arith.constant 0 : i32
    %c0_i32_0 = arith.constant 0 : i32
    return %arg0, %c0_i32 : i32, i32
  }
  func.func @transform_1(%arg0: i32) -> (i32, i32) {
    %c0_i32 = arith.constant 0 : i32
    %c0_i32_0 = arith.constant 0 : i32
    %c0_i32_1 = arith.constant 0 : i32
    return %c0_i32, %c0_i32_0 : i32, i32
  }
  func.func @transform_2(%arg0: i32) -> (i32, i32) {
    %c0_i32 = arith.constant 0 : i32
    %c0_i32_0 = arith.constant 0 : i32
    %c0_i32_1 = arith.constant 0 : i32
    return %c0_i32, %c0_i32_0 : i32, i32
  }
  func.func @transform_3(%arg0: i32) -> (i32, i32) {
    %c0_i32 = arith.constant 0 : i32
    %c0_i32_0 = arith.constant 0 : i32
    %c0_i32_1 = arith.constant 0 : i32
    return %c0_i32, %c0_i32_0 : i32, i32
  }
  func.func @transform_4(%arg0: i32) -> (i32, i32) {
    %c0_i32 = arith.constant 0 : i32
    %c0_i32_0 = arith.constant 0 : i32
    %c0_i32_1 = arith.constant 0 : i32
    return %c0_i32, %c0_i32_0 : i32, i32
  }
  func.func @transform_5(%arg0: i32) -> (i32, i32) {
    %c0_i32 = arith.constant 0 : i32
    %c0_i32_0 = arith.constant 0 : i32
    %c0_i32_1 = arith.constant 0 : i32
    return %c0_i32, %c0_i32_0 : i32, i32
  }
  func.func @transform_6(%arg0: i32) -> (i32, i32) {
    %c0_i32 = arith.constant 0 : i32
    %c0_i32_0 = arith.constant 0 : i32
    %c0_i32_1 = arith.constant 0 : i32
    return %c0_i32, %c0_i32_0 : i32, i32
  }
  func.func @transform_7(%arg0: i32) -> (i32, i32) {
    %c0_i32 = arith.constant 0 : i32
    %c0_i32_0 = arith.constant 0 : i32
    return %c0_i32, %arg0 : i32, i32
  }
}

</mosaic_0001>

<llo_original>
// kernel: tpu_custom_call.1
$region0: #{tpu_custom_call.1}
  #allocation0 [shape = 'u32[]', space=smem, size = 0x4, offset = 0x4, fixed_abs, tag = 'smem constant byte address 0x4 - core index']
  #allocation1 [shape = 'u32[144,128]{1,0:T(1,128)}', space=vmem, size = 0x12000, scoped, tag = 'internal scratch']
  #allocation2 [shape = 'f32[1,1]{1,0:T(1,128)S(1)}', space=vmem, size = 0x200, scoped, tag = 'scoped memory for tpu_custom_call.1']
  %s0 = inlined_call_operand.vmem [shape: f32[600,16], index: 0, kind: input, shape index: {}]
  %s1 = inlined_call_operand.vmem [shape: f32[32,16], index: 1, kind: input, shape index: {}]
  %s2 = inlined_call_operand.vmem [shape: f32[32,1], index: 2, kind: input, shape index: {}]
  %s3 = inlined_call_operand.vmem [shape: f32[32,32], index: 3, kind: input, shape index: {}]
  %s4 = inlined_call_operand.vmem [shape: f32[32,1], index: 4, kind: input, shape index: {}]
  %s5 = inlined_call_operand.vmem [shape: f32[1,32], index: 5, kind: input, shape index: {}]
  %s6 = inlined_call_operand.<no memory space> [shape: f32[1,1], index: 6, kind: input, shape index: {}]
  %s7 = inlined_call_operand.hbm [shape: f32[1,600], index: 7, kind: output, shape index: {}]
  %s8 = sld [smem:[#allocation0]]
  $region61: #{tpu_custom_call.1} parent=0
    _
  %s10 = ssub.s32 1, %s8
  %s11 = scalar_select 0, %s10, %s8
  %v12 = vstv %s6
  %13 = vst [vmem:[#allocation2] sm:$0x1] %v12
  $region1: #{tpu_custom_call.1} parent=0
    #allocation3 [shape = 'u8[2048]{0}', space=vmem, size = 0x800, scoped, tag = 'output window, operand 0']
    #allocation4 [shape = 's32[2]{0}', space=sflag, size = 0x8, scoped, tag = 'scoped memory for tpu_custom_call.1']
    %14 = vsyncpa [#allocation4], 0
    %s15 = scalar_lea.sflag [#allocation4], 1
    %16 = vsyncpa %s15, 0
    loop: start=0, step=1, limit=5
    $region2: #{tpu_custom_call.1} parent=1 // loop_pre_header
      _
    $region3: #{tpu_custom_call.1} parent=1 // loop_header
      %s18 = sphi 0, %s22
      %p19 = scmp.ge.s32.totalorder %s18, 5
      %s28 = sphi 0, %s30
      %s31 = sphi 0, %s28
      %s32 = sphi 0, %s31
      %s48 = sphi 0, %s32
      %s52 = sphi 0, %s52
      %s54 = sphi 0, %s52
      %s55 = sphi 0, %s54
      %s69 = sphi 0, %s55
      %s73 = sphi 0, %s73
      %s75 = sphi 0, %s73
      %s76 = sphi 0, %s75
      %s90 = sphi 0, %s76
      %s94 = sphi 0, %s94
      %s96 = sphi 0, %s94
      %s97 = sphi 0, %s96
      %s111 = sphi 0, %s97
      %s115 = sphi 0, %s115
      %s117 = sphi 0, %s115
      %s118 = sphi 0, %s117
      %s132 = sphi 0, %s118
      %s136 = sphi 0, %s136
      %s138 = sphi 0, %s136
      %s139 = sphi 0, %s138
      %s153 = sphi 0, %s139
      %s157 = sphi 0, %s157
      %s159 = sphi 0, %s157
      %s160 = sphi 0, %s159
      %s174 = sphi 0, %s160
      %s180 = sphi 0, %s182
      %s183 = sphi 0, %s180
      %s184 = sphi 0, %s183
      %s200 = sphi 0, %s184
    $region4: #{tpu_custom_call.1} parent=1 // loop_header_branch
      %21 = sbr.rel (%p19) target = $region8
    $region5: #{tpu_custom_call.1} parent=1 // loop_body
      %s23 = ssub.s32 %s18, 1
      %s24 = ssub.s32 %s18, 2
      %s25 = sadd.s32 %s18, 1
      %s26 = ssub.s32 %s18, %s25
      %p27 = scmp.eq.s32.totalorder %s26, 0
      %s29 = sadd.s32 %s28, 1
      %s30 = scalar_select %p27, %s28, %s29
      %p33 = pneg %p27
      %p34 = scmp.eq.s32.totalorder %s18, 2
      %p35 = por %p33, %p34
      %p36 = scmp.ne.s32.totalorder %s28, %s31
      %p37 = scmp.eq.s32.totalorder %s18, 0
      %p38 = por %p36, %p37
      %p39 = scmp.ne.s32.totalorder %s28, %s31
      %p40 = scmp.eq.s32.totalorder %s23, 2
      %p41 = por %p39, %p40
      %p42 = scmp.ne.s32.totalorder %s31, %s32
      %p43 = scmp.eq.s32.totalorder %s23, 0
      %p44 = por %p42, %p43
      %p45 = scmp.ne.s32.totalorder %s31, %s32
      %p46 = scmp.eq.s32.totalorder %s24, 2
      %p47 = por %p45, %p46
      %p49 = scmp.ne.s32.totalorder %s32, %s48
      %p50 = scmp.eq.s32.totalorder %s24, 0
      %p51 = por %p49, %p50
      %s53 = sadd.s32 %s52, 1
      %p56 = scmp.eq.s32.totalorder %s18, 2
      %p57 = scmp.ne.s32.totalorder %s52, %s54
      %p58 = scmp.eq.s32.totalorder %s18, 0
      %p59 = por %p57, %p58
      %p60 = scmp.ne.s32.totalorder %s52, %s54
      %p61 = scmp.eq.s32.totalorder %s23, 2
      %p62 = por %p60, %p61
      %p63 = scmp.ne.s32.totalorder %s54, %s55
      %p64 = scmp.eq.s32.totalorder %s23, 0
      %p65 = por %p63, %p64
      %p66 = scmp.ne.s32.totalorder %s54, %s55
      %p67 = scmp.eq.s32.totalorder %s24, 2
      %p68 = por %p66, %p67
      %p70 = scmp.ne.s32.totalorder %s55, %s69
      %p71 = scmp.eq.s32.totalorder %s24, 0
      %p72 = por %p70, %p71
      %s74 = sadd.s32 %s73, 1
      %p77 = scmp.eq.s32.totalorder %s18, 2
      %p78 = scmp.ne.s32.totalorder %s73, %s75
      %p79 = scmp.eq.s32.totalorder %s18, 0
      %p80 = por %p78, %p79
      %p81 = scmp.ne.s32.totalorder %s73, %s75
      %p82 = scmp.eq.s32.totalorder %s23, 2
      %p83 = por %p81, %p82
      %p84 = scmp.ne.s32.totalorder %s75, %s76
      %p85 = scmp.eq.s32.totalorder %s23, 0
      %p86 = por %p84, %p85
      %p87 = scmp.ne.s32.totalorder %s75, %s76
      %p88 = scmp.eq.s32.totalorder %s24, 2
      %p89 = por %p87, %p88
      %p91 = scmp.ne.s32.totalorder %s76, %s90
      %p92 = scmp.eq.s32.totalorder %s24, 0
      %p93 = por %p91, %p92
      %s95 = sadd.s32 %s94, 1
      %p98 = scmp.eq.s32.totalorder %s18, 2
      %p99 = scmp.ne.s32.totalorder %s94, %s96
      %p100 = scmp.eq.s32.totalorder %s18, 0
      %p101 = por %p99, %p100
      %p102 = scmp.ne.s32.totalorder %s94, %s96
      %p103 = scmp.eq.s32.totalorder %s23, 2
      %p104 = por %p102, %p103
      %p105 = scmp.ne.s32.totalorder %s96, %s97
      %p106 = scmp.eq.s32.totalorder %s23, 0
      %p107 = por %p105, %p106
      %p108 = scmp.ne.s32.totalorder %s96, %s97
      %p109 = scmp.eq.s32.totalorder %s24, 2
      %p110 = por %p108, %p109
      %p112 = scmp.ne.s32.totalorder %s97, %s111
      %p113 = scmp.eq.s32.totalorder %s24, 0
      %p114 = por %p112, %p113
      %s116 = sadd.s32 %s115, 1
      %p119 = scmp.eq.s32.totalorder %s18, 2
      %p120 = scmp.ne.s32.totalorder %s115, %s117
      %p121 = scmp.eq.s32.totalorder %s18, 0
      %p122 = por %p120, %p121
      %p123 = scmp.ne.s32.totalorder %s115, %s117
      %p124 = scmp.eq.s32.totalorder %s23, 2
      %p125 = por %p123, %p124
      %p126 = scmp.ne.s32.totalorder %s117, %s118
      %p127 = scmp.eq.s32.totalorder %s23, 0
      %p128 = por %p126, %p127
      %p129 = scmp.ne.s32.totalorder %s117, %s118
      %p130 = scmp.eq.s32.totalorder %s24, 2
      %p131 = por %p129, %p130
      %p133 = scmp.ne.s32.totalorder %s118, %s132
      %p134 = scmp.eq.s32.totalorder %s24, 0
      %p135 = por %p133, %p134
      %s137 = sadd.s32 %s136, 1
      %p140 = scmp.eq.s32.totalorder %s18, 2
      %p141 = scmp.ne.s32.totalorder %s136, %s138
      %p142 = scmp.eq.s32.totalorder %s18, 0
      %p143 = por %p141, %p142
      %p144 = scmp.ne.s32.totalorder %s136, %s138
      %p145 = scmp.eq.s32.totalorder %s23, 2
      %p146 = por %p144, %p145
      %p147 = scmp.ne.s32.totalorder %s138, %s139
      %p148 = scmp.eq.s32.totalorder %s23, 0
      %p149 = por %p147, %p148
      %p150 = scmp.ne.s32.totalorder %s138, %s139
      %p151 = scmp.eq.s32.totalorder %s24, 2
      %p152 = por %p150, %p151
      %p154 = scmp.ne.s32.totalorder %s139, %s153
      %p155 = scmp.eq.s32.totalorder %s24, 0
      %p156 = por %p154, %p155
      %s158 = sadd.s32 %s157, 1
      %p161 = scmp.eq.s32.totalorder %s18, 2
      %p162 = scmp.ne.s32.totalorder %s157, %s159
      %p163 = scmp.eq.s32.totalorder %s18, 0
      %p164 = por %p162, %p163
      %p165 = scmp.ne.s32.totalorder %s157, %s159
      %p166 = scmp.eq.s32.totalorder %s23, 2
      %p167 = por %p165, %p166
      %p168 = scmp.ne.s32.totalorder %s159, %s160
      %p169 = scmp.eq.s32.totalorder %s23, 0
      %p170 = por %p168, %p169
      %p171 = scmp.ne.s32.totalorder %s159, %s160
      %p172 = scmp.eq.s32.totalorder %s24, 2
      %p173 = por %p171, %p172
      %p175 = scmp.ne.s32.totalorder %s160, %s174
      %p176 = scmp.eq.s32.totalorder %s24, 0
      %p177 = por %p175, %p176
      %s178 = ssub.s32 %s18, %s25
      %p179 = scmp.eq.s32.totalorder %s178, 0
      %s181 = sadd.s32 %s180, 1
      %s182 = scalar_select %p179, %s180, %s181
      %p185 = pneg %p179
      %p186 = scmp.eq.s32.totalorder %s18, 2
      %p187 = por %p185, %p186
      %p188 = scmp.ne.s32.totalorder %s180, %s183
      %p189 = scmp.eq.s32.totalorder %s18, 0
      %p190 = por %p188, %p189
      %p191 = scmp.ne.s32.totalorder %s180, %s183
      %p192 = scmp.eq.s32.totalorder %s23, 2
      %p193 = por %p191, %p192
      %p194 = scmp.ne.s32.totalorder %s183, %s184
      %p195 = scmp.eq.s32.totalorder %s23, 0
      %p196 = por %p194, %p195
      %p197 = scmp.ne.s32.totalorder %s183, %s184
      %p198 = scmp.eq.s32.totalorder %s24, 2
      %p199 = por %p197, %p198
      %p201 = scmp.ne.s32.totalorder %s184, %s200
      %p202 = scmp.eq.s32.totalorder %s24, 0
      %p203 = por %p201, %p202
      %p204 = scmp.le.s32.totalorder 1, %s18
      %p205 = scmp.lt.s32.totalorder %s18, 4
      %p206 = pnand %p204, %p205
      %p207 = pneg %p206
      // Predicated region
      $region9: #{tpu_custom_call.1} parent=5 // pred_check
        _
      $region10: #{tpu_custom_call.1} parent=5 // pred_check_branch
        %209 = sbr.rel (%p206) target = $region12
      $region11: #{tpu_custom_call.1} parent=5 // pred_region
        %s210 = ssub.s32 %s18, 1
        // Predicated region
        $region13: #{tpu_custom_call.1} parent=11 // pred_check
          %p211 = pneg %p65
        $region14: #{tpu_custom_call.1} parent=11 // pred_check_branch
          %213 = sbr.rel (%p211) target = $region16
        $region15: #{tpu_custom_call.1} parent=11 // pred_region
          _
        $region16: #{tpu_custom_call.1} parent=11 // pred_fallthru
          _
        // Predicated region
        $region17: #{tpu_custom_call.1} parent=11 // pred_check
          %p214 = pneg %p86
        $region18: #{tpu_custom_call.1} parent=11 // pred_check_branch
          %216 = sbr.rel (%p214) target = $region20
        $region19: #{tpu_custom_call.1} parent=11 // pred_region
          _
        $region20: #{tpu_custom_call.1} parent=11 // pred_fallthru
          _
        // Predicated region
        $region21: #{tpu_custom_call.1} parent=11 // pred_check
          %p217 = pneg %p107
        $region22: #{tpu_custom_call.1} parent=11 // pred_check_branch
          %219 = sbr.rel (%p217) target = $region24
        $region23: #{tpu_custom_call.1} parent=11 // pred_region
          _
        $region24: #{tpu_custom_call.1} parent=11 // pred_fallthru
          _
        // Predicated region
        $region25: #{tpu_custom_call.1} parent=11 // pred_check
          %p220 = pneg %p128
        $region26: #{tpu_custom_call.1} parent=11 // pred_check_branch
          %222 = sbr.rel (%p220) target = $region28
        $region27: #{tpu_custom_call.1} parent=11 // pred_region
          _
        $region28: #{tpu_custom_call.1} parent=11 // pred_fallthru
          _
        // Predicated region
        $region29: #{tpu_custom_call.1} parent=11 // pred_check
          %p223 = pneg %p149
        $region30: #{tpu_custom_call.1} parent=11 // pred_check_branch
          %225 = sbr.rel (%p223) target = $region32
        $region31: #{tpu_custom_call.1} parent=11 // pred_region
          _
        $region32: #{tpu_custom_call.1} parent=11 // pred_fallthru
          _
        // Predicated region
        $region33: #{tpu_custom_call.1} parent=11 // pred_check
          %p226 = pneg %p170
        $region34: #{tpu_custom_call.1} parent=11 // pred_check_branch
          %228 = sbr.rel (%p226) target = $region36
        $region35: #{tpu_custom_call.1} parent=11 // pred_region
          _
        $region36: #{tpu_custom_call.1} parent=11 // pred_fallthru
          _
      $region12: #{tpu_custom_call.1} parent=5 // pred_fallthru
        _
      %p229 = scmp.lt.s32.totalorder %s18, 3
      // Predicated region
      $region37: #{tpu_custom_call.1} parent=5 // pred_check
        %p230 = pneg %p229
      $region38: #{tpu_custom_call.1} parent=5 // pred_check_branch
        %232 = sbr.rel (%p230) target = $region40
      $region39: #{tpu_custom_call.1} parent=5 // pred_region
        // Predicated region
        $region41: #{tpu_custom_call.1} parent=39 // pred_check
          %p233 = pneg %p38
        $region42: #{tpu_custom_call.1} parent=39 // pred_check_branch
          %235 = sbr.rel (%p233) target = $region44
        $region43: #{tpu_custom_call.1} parent=39 // pred_region
          %s236 = smul.u32 32, %s18
          %s237 = ssub.s32 75, %s236
          %p238 = scmp.lt.s32.totalorder %s237, 32
          %s239 = scalar_select %p238, %s237, 32
          %s240 = smul.u32 128, %s239
          %p241 = scmp.lt.s32.totalorder %s236, 74
          %s242 = scalar_select %p241, %s236, 74
          %s243 = smul.addr %s242, 8
          %s244 = scalar_lea.vmem %s0, %s243
          %s245 = smul.u32 32, %s18
          %s246 = ssub.s32 75, %s245
          %p247 = scmp.lt.s32.totalorder %s246, 32
          %s248 = scalar_select %p247, %s246, 32
          %s249 = smul.u32 128, %s248
        $region44: #{tpu_custom_call.1} parent=39 // pred_fallthru
          _
      $region40: #{tpu_custom_call.1} parent=5 // pred_fallthru
        _
      %p250 = scmp.le.s32.totalorder 1, %s18
      %p251 = scmp.lt.s32.totalorder %s18, 4
      %p252 = pnand %p250, %p251
      %p253 = pneg %p252
      // Predicated region
      $region45: #{tpu_custom_call.1} parent=5 // pred_check
        _
      $region46: #{tpu_custom_call.1} parent=5 // pred_check_branch
        %255 = sbr.rel (%p252) target = $region48
      $region47: #{tpu_custom_call.1} parent=5 // pred_region
        %s256 = ssub.s32 %s18, 1
        %s257 = smul.u32 32, %s23
        %s258 = ssub.s32 75, %s257
        %p259 = scmp.lt.s32.totalorder %s258, 32
        %s260 = scalar_select %p259, %s258, 32
        %s261 = smul.u32 128, %s260
        %p262 = scmp.lt.s32.totalorder %s257, 74
        %s263 = scalar_select %p262, %s257, 74
        %s264 = smul.addr %s263, 8
        %s265 = scalar_lea.vmem %s0, %s264
        %p266 = pneg %p44
        %p267 = pneg %p41
        %p268 = pneg %p65
        %p269 = pneg %p62
        %p270 = pneg %p86
        %p271 = pneg %p83
        %p272 = pneg %p107
        %p273 = pneg %p104
        %p274 = pneg %p128
        %p275 = pneg %p125
        %p276 = pneg %p149
        %p277 = pneg %p146
        %p278 = pneg %p170
        %p279 = pneg %p167
        %p280 = pneg %p196
        %p281 = pneg %p193
        %s282 = sand.u32 %s183, 1
        %s283 = scalar_lea.sflag [#allocation4], %s282
        %s284 = sand.u32 %s183, 1
        %s285 = smul.addr %s284, 2
        %s286 = scalar_lea.vmem [#allocation3], %s285
        %s287 = smul.u32 32, %s23
        %s288 = ssub.s32 75, %s287
        %p289 = scmp.lt.s32.totalorder %s288, 32
        %s290 = scalar_select %p289, %s288, 32
        %s291 = smul.u32 128, %s290
        %p292 = scmp.lt.s32.totalorder %s287, 74
        %s293 = scalar_select %p292, %s287, 74
        %s294 = smul.addr %s293, 8
        %s295 = scalar_lea.vmem %s0, %s294
        %s296 = smul.u32 32, %s23
        %s297 = ssub.s32 75, %s296
        %p298 = scmp.lt.s32.totalorder %s297, 32
        %s299 = scalar_select %p298, %s297, 32
        %s300 = smul.u32 128, %s299
        %s301 = smul.u32 2, %s23
        %s302 = ssub.s32 5, %s301
        %p303 = scmp.lt.s32.totalorder %s302, 2
        %s304 = scalar_select %p303, %s302, 2
        %s305 = smul.u32 16, %s304
        %v306 = vld [vmem:[%s1] sm:$0xff]
        %v307 = vld [vmem:[%s1 + $0x8] sm:$0xff]
        %v308 = vld [vmem:[%s1 + $0x10] sm:$0xff]
        %v309 = vld [vmem:[%s1 + $0x18] sm:$0xff]
        %v310 = vld [vmem:[%s295] sm:$0xff]
        %v311 = vld [vmem:[%s295 + $0x8] sm:$0xff]
        %v312 = vld [vmem:[%s295 + $0x10] sm:$0xff]
        %v313 = vld [vmem:[%s295 + $0x18] sm:$0xff]
        %v314 = vld [vmem:[%s295 + $0x20] sm:$0xff]
        %v315 = vld [vmem:[%s295 + $0x28] sm:$0xff]
        %v316 = vld [vmem:[%s295 + $0x30] sm:$0xff]
        %v317 = vld [vmem:[%s295 + $0x38] sm:$0xff]
        %v318 = vld [vmem:[%s295 + $0x40] sm:$0xff]
        %v319 = vld [vmem:[%s295 + $0x48] sm:$0xff]
        %v320 = vld [vmem:[%s295 + $0x50] sm:$0xff]
        %v321 = vld [vmem:[%s295 + $0x58] sm:$0xff]
        %v322 = vld [vmem:[%s295 + $0x60] sm:$0xff]
        %v323 = vld [vmem:[%s295 + $0x68] sm:$0xff]
        %v324 = vld [vmem:[%s295 + $0x70] sm:$0xff]
        %v325 = vld [vmem:[%s295 + $0x78] sm:$0xff]
        %v326 = vld [vmem:[%s295 + $0x80] sm:$0xff]
        %v327 = vld [vmem:[%s295 + $0x88] sm:$0xff]
        %v328 = vld [vmem:[%s295 + $0x90] sm:$0xff]
        %v329 = vld [vmem:[%s295 + $0x98] sm:$0xff]
        %v330 = vld [vmem:[%s295 + $0xa0] sm:$0xff]
        %v331 = vld [vmem:[%s295 + $0xa8] sm:$0xff]
        %v332 = vld [vmem:[%s295 + $0xb0] sm:$0xff]
        %v333 = vld [vmem:[%s295 + $0xb8] sm:$0xff]
        %v334 = vld [vmem:[%s295 + $0xc0] sm:$0xff]
        %v335 = vld [vmem:[%s295 + $0xc8] sm:$0xff]
        %v336 = vld [vmem:[%s295 + $0xd0] sm:$0xff]
        %v337 = vld [vmem:[%s295 + $0xd8] sm:$0xff]
        %v338 = vld [vmem:[%s295 + $0xe0] sm:$0xff]
        %v339 = vld [vmem:[%s295 + $0xe8] sm:$0xff]
        %v340 = vld [vmem:[%s295 + $0xf0] sm:$0xff]
        %v341 = vld [vmem:[%s295 + $0xf8] sm:$0xff]
        %v342 = vld [vmem:[%s2] sm:$0xff]
        %v343 = vld [vmem:[%s2 + $0x8] sm:$0xff]
        %v344 = vld [vmem:[%s2 + $0x10] sm:$0xff]
        %v345 = vld [vmem:[%s2 + $0x18] sm:$0xff]
        %347 = vset.pattern.permute.xlu0 0
        %348 = vperm.xlu0 %347, %v342
        %v349 = vpop.permute.xlu0 %348
        %352 = vset.pattern.permute.xlu0 0
        %353 = vperm.xlu0 %352, %v343
        %v354 = vpop.permute.xlu0 %353
        %357 = vset.pattern.permute.xlu0 0
        %358 = vperm.xlu0 %357, %v344
        %v359 = vpop.permute.xlu0 %358
        %362 = vset.pattern.permute.xlu0 0
        %363 = vperm.xlu0 %362, %v345
        %v364 = vpop.permute.xlu0 %363
        %vm366 = vcmask 130048
        %v368 = vsel %vm366, %v306, 0
        %v371 = vsel %vm366, %v307, 0
        %v374 = vsel %vm366, %v308, 0
        %v377 = vsel %vm366, %v309, 0
        %v380 = vsel %vm366, %v310, 0
        %v383 = vsel %vm366, %v311, 0
        %v386 = vsel %vm366, %v312, 0
        %v389 = vsel %vm366, %v313, 0
        %v392 = vsel %vm366, %v314, 0
        %v395 = vsel %vm366, %v315, 0
        %v398 = vsel %vm366, %v316, 0
        %v401 = vsel %vm366, %v317, 0
        %v404 = vsel %vm366, %v318, 0
        %v407 = vsel %vm366, %v319, 0
        %v410 = vsel %vm366, %v320, 0
        %v413 = vsel %vm366, %v321, 0
        %v416 = vsel %vm366, %v322, 0
        %v419 = vsel %vm366, %v323, 0
        %v422 = vsel %vm366, %v324, 0
        %v425 = vsel %vm366, %v325, 0
        %v428 = vsel %vm366, %v326, 0
        %v431 = vsel %vm366, %v327, 0
        %v434 = vsel %vm366, %v328, 0
        %v437 = vsel %vm366, %v329, 0
        %v440 = vsel %vm366, %v330, 0
        %v443 = vsel %vm366, %v331, 0
        %v446 = vsel %vm366, %v332, 0
        %v449 = vsel %vm366, %v333, 0
        %v452 = vsel %vm366, %v334, 0
        %v455 = vsel %vm366, %v335, 0
        %v458 = vsel %vm366, %v336, 0
        %v461 = vsel %vm366, %v337, 0
        %v464 = vsel %vm366, %v338, 0
        %v467 = vsel %vm366, %v339, 0
        %v470 = vsel %vm366, %v340, 0
        %v473 = vsel %vm366, %v341, 0
        %475 = vmatprep.subr.mxu0 0.0
        %476 = vmatpush1.xpose.msra.mxu0 %v380
        %477 = vmatprep.subr.mxu0 0.0
        %478 = vmatpush1.xpose.msra.mxu0 %v383
        %479 = vmatprep.subr.mxu0 0.0
        %480 = vmatpush1.xpose.msra.mxu0 %v386
        %481 = vmatprep.subr.mxu0 0.0
        %482 = vmatpush1.xpose.msra.mxu0 %v389
        %483 = vmatprep.subr.mxu0 0.0
        %484 = vmatpush1.xpose.msra.mxu0 %v392
        %485 = vmatprep.subr.mxu0 0.0
        %486 = vmatpush1.xpose.msra.mxu0 %v395
        %487 = vmatprep.subr.mxu0 0.0
        %488 = vmatpush1.xpose.msra.mxu0 %v398
        %489 = vmatprep.subr.mxu0 0.0
        %490 = vmatpush1.xpose.msra.mxu0 %v401
        %491 = vmatprep.subr.mxu0 0.0
        %492 = vmatpush1.xpose.msra.mxu0 %v404
        %493 = vmatprep.subr.mxu0 0.0
        %494 = vmatpush1.xpose.msra.mxu0 %v407
        %495 = vmatprep.subr.mxu0 0.0
        %496 = vmatpush1.xpose.msra.mxu0 %v410
        %497 = vmatprep.subr.mxu0 0.0
        %498 = vmatpush1.xpose.msra.mxu0 %v413
        %499 = vmatprep.subr.mxu0 0.0
        %500 = vmatpush1.xpose.msra.mxu0 %v416
        %501 = vmatprep.subr.mxu0 0.0
        %502 = vmatpush1.xpose.msra.mxu0 %v419
        %503 = vmatprep.subr.mxu0 0.0
        %504 = vmatpush1.xpose.msra.mxu0 %v422
        %505 = vmatprep.subr.mxu0 0.0
        %506 = vmatpush1.xpose.msra.mxu0 %v425
        %507 = vmatprep.subr.mxu0 0.0
        %508 = vmatpush1.xpose.msra.mxu0 %v428
        %509 = vmatprep.subr.mxu0 0.0
        %510 = vmatpush1.xpose.msra.mxu0 %v431
        %511 = vmatprep.subr.mxu0 0.0
        %512 = vmatpush1.xpose.msra.mxu0 %v434
        %513 = vmatprep.subr.mxu0 0.0
        %514 = vmatpush1.xpose.msra.mxu0 %v437
        %515 = vmatprep.subr.mxu0 0.0
        %516 = vmatpush1.xpose.msra.mxu0 %v440
        %517 = vmatprep.subr.mxu0 0.0
        %518 = vmatpush1.xpose.msra.mxu0 %v443
        %519 = vmatprep.subr.mxu0 0.0
        %520 = vmatpush1.xpose.msra.mxu0 %v446
        %521 = vmatprep.subr.mxu0 0.0
        %522 = vmatpush1.xpose.msra.mxu0 %v449
        %523 = vmatprep.subr.mxu0 0.0
        %524 = vmatpush1.xpose.msra.mxu0 %v452
        %525 = vmatprep.subr.mxu0 0.0
        %526 = vmatpush1.xpose.msra.mxu0 %v455
        %527 = vmatprep.subr.mxu0 0.0
        %528 = vmatpush1.xpose.msra.mxu0 %v458
        %529 = vmatprep.subr.mxu0 0.0
        %530 = vmatpush1.xpose.msra.mxu0 %v461
        %531 = vmatprep.subr.mxu0 0.0
        %532 = vmatpush1.xpose.msra.mxu0 %v464
        %533 = vmatprep.subr.mxu0 0.0
        %534 = vmatpush1.xpose.msra.mxu0 %v467
        %535 = vmatprep.subr.mxu0 0.0
        %536 = vmatpush1.xpose.msra.mxu0 %v470
        %537 = vmatprep.subr.mxu0 0.0
        %538 = vmatpush1.xpose.msra.mxu0 %v473
        %539 = vmatprep.mubr.f32.mxu0 0.0
        %540 = vmatmul.mubr.f32.gmra.mrb[0].mxu0 %v368
        %v541 = vpop.f32.mrb[0].mxu0
        %v542 = vadd.f32 %v349, %v541
        %v543 = vpop.f32.mrb[0].mxu0
        %v544 = vadd.f32 %v349, %v543
        %545 = vmatprep.mubr.f32.mxu0 0.0
        %546 = vmatmul.mubr.f32.gmra.mrb[0].mxu0 %v371
        %v547 = vpop.f32.mrb[0].mxu0
        %v548 = vadd.f32 %v354, %v547
        %v549 = vpop.f32.mrb[0].mxu0
        %v550 = vadd.f32 %v354, %v549
        %551 = vmatprep.mubr.f32.mxu0 0.0
        %552 = vmatmul.mubr.f32.gmra.mrb[0].mxu0 %v374
        %v553 = vpop.f32.mrb[0].mxu0
        %v554 = vadd.f32 %v359, %v553
        %v555 = vpop.f32.mrb[0].mxu0
        %v556 = vadd.f32 %v359, %v555
        %557 = vmatprep.mubr.f32.mxu0 0.0
        %558 = vmatmul.mubr.f32.gmra.mrb[0].mxu0 %v377
        %v559 = vpop.f32.mrb[0].mxu0
        %v560 = vadd.f32 %v364, %v559
        %v561 = vpop.f32.mrb[0].mxu0
        %v562 = vadd.f32 %v364, %v561
        %563 = vdwg.mxu0
        %v564 = vmax.f32 %v542, 0.0
        %v565 = vmax.f32 %v544, 0.0
        %v566 = vmax.f32 %v548, 0.0
        %v567 = vmax.f32 %v550, 0.0
        %v568 = vmax.f32 %v554, 0.0
        %v569 = vmax.f32 %v556, 0.0
        %v570 = vmax.f32 %v560, 0.0
        %v571 = vmax.f32 %v562, 0.0
        %v572 = vld [vmem:[%s3] sm:$0xff]
        %v573 = vld [vmem:[%s3 + $0x8] sm:$0xff]
        %v574 = vld [vmem:[%s3 + $0x10] sm:$0xff]
        %v575 = vld [vmem:[%s3 + $0x18] sm:$0xff]
        %v576 = vld [vmem:[%s4] sm:$0xff]
        %v577 = vld [vmem:[%s4 + $0x8] sm:$0xff]
        %v578 = vld [vmem:[%s4 + $0x10] sm:$0xff]
        %v579 = vld [vmem:[%s4 + $0x18] sm:$0xff]
        %581 = vset.pattern.permute.xlu0 0
        %582 = vperm.xlu0 %581, %v576
        %v583 = vpop.permute.xlu0 %582
        %586 = vset.pattern.permute.xlu0 0
        %587 = vperm.xlu0 %586, %v577
        %v588 = vpop.permute.xlu0 %587
        %591 = vset.pattern.permute.xlu0 0
        %592 = vperm.xlu0 %591, %v578
        %v593 = vpop.permute.xlu0 %592
        %596 = vset.pattern.permute.xlu0 0
        %597 = vperm.xlu0 %596, %v579
        %v598 = vpop.permute.xlu0 %597
        %vm600 = vcmask 261120
        %v602 = vsel %vm600, %v572, 0
        %v605 = vsel %vm600, %v573, 0
        %v608 = vsel %vm600, %v574, 0
        %v611 = vsel %vm600, %v575, 0
        %613 = vmatprep.subr.mxu0 %v565
        %614 = vmatpush1.msra.mxu0 %v564
        %615 = vmatprep.subr.mxu0 %v567
        %616 = vmatpush1.msra.mxu0 %v566
        %617 = vmatprep.subr.mxu0 %v569
        %618 = vmatpush1.msra.mxu0 %v568
        %619 = vmatprep.subr.mxu0 %v571
        %620 = vmatpush1.msra.mxu0 %v570
        %621 = vmatprep.subr.mxu0 0.0
        %622 = vmatpush1.msra.mxu0 0.0
        %623 = vmatprep.subr.mxu0 0.0
        %624 = vmatpush1.msra.mxu0 0.0
        %625 = vmatprep.subr.mxu0 0.0
        %626 = vmatpush1.msra.mxu0 0.0
        %627 = vmatprep.subr.mxu0 0.0
        %628 = vmatpush1.msra.mxu0 0.0
        %629 = vmatprep.subr.mxu0 0.0
        %630 = vmatpush1.msra.mxu0 0.0
        %631 = vmatprep.subr.mxu0 0.0
        %632 = vmatpush1.msra.mxu0 0.0
        %633 = vmatprep.subr.mxu0 0.0
        %634 = vmatpush1.msra.mxu0 0.0
        %635 = vmatprep.subr.mxu0 0.0
        %636 = vmatpush1.msra.mxu0 0.0
        %637 = vmatprep.subr.mxu0 0.0
        %638 = vmatpush1.msra.mxu0 0.0
        %639 = vmatprep.subr.mxu0 0.0
        %640 = vmatpush1.msra.mxu0 0.0
        %641 = vmatprep.subr.mxu0 0.0
        %642 = vmatpush1.msra.mxu0 0.0
        %643 = vmatprep.subr.mxu0 0.0
        %644 = vmatpush1.msra.mxu0 0.0
        %645 = vmatprep.subr.mxu0 0.0
        %646 = vmatpush1.msra.mxu0 0.0
        %647 = vmatprep.subr.mxu0 0.0
        %648 = vmatpush1.msra.mxu0 0.0
        %649 = vmatprep.subr.mxu0 0.0
        %650 = vmatpush1.msra.mxu0 0.0
        %651 = vmatprep.subr.mxu0 0.0
        %652 = vmatpush1.msra.mxu0 0.0
        %653 = vmatprep.subr.mxu0 0.0
        %654 = vmatpush1.msra.mxu0 0.0
        %655 = vmatprep.subr.mxu0 0.0
        %656 = vmatpush1.msra.mxu0 0.0
        %657 = vmatprep.subr.mxu0 0.0
        %658 = vmatpush1.msra.mxu0 0.0
        %659 = vmatprep.subr.mxu0 0.0
        %660 = vmatpush1.msra.mxu0 0.0
        %661 = vmatprep.subr.mxu0 0.0
        %662 = vmatpush1.msra.mxu0 0.0
        %663 = vmatprep.subr.mxu0 0.0
        %664 = vmatpush1.msra.mxu0 0.0
        %665 = vmatprep.subr.mxu0 0.0
        %666 = vmatpush1.msra.mxu0 0.0
        %667 = vmatprep.subr.mxu0 0.0
        %668 = vmatpush1.msra.mxu0 0.0
        %669 = vmatprep.subr.mxu0 0.0
        %670 = vmatpush1.msra.mxu0 0.0
        %671 = vmatprep.subr.mxu0 0.0
        %672 = vmatpush1.msra.mxu0 0.0
        %673 = vmatprep.subr.mxu0 0.0
        %674 = vmatpush1.msra.mxu0 0.0
        %675 = vmatprep.subr.mxu0 0.0
        %676 = vmatpush1.msra.mxu0 0.0
        %677 = vmatprep.mubr.f32.mxu0 0.0
        %678 = vmatmul.mubr.f32.gmra.mrb[0].mxu0 %v602
        %v679 = vpop.f32.mrb[0].mxu0
        %v680 = vadd.f32 %v583, %v679
        %v681 = vpop.f32.mrb[0].mxu0
        %v682 = vadd.f32 %v583, %v681
        %683 = vmatprep.mubr.f32.mxu0 0.0
        %684 = vmatmul.mubr.f32.gmra.mrb[0].mxu0 %v605
        %v685 = vpop.f32.mrb[0].mxu0
        %v686 = vadd.f32 %v588, %v685
        %v687 = vpop.f32.mrb[0].mxu0
        %v688 = vadd.f32 %v588, %v687
        %689 = vmatprep.mubr.f32.mxu0 0.0
        %690 = vmatmul.mubr.f32.gmra.mrb[0].mxu0 %v608
        %v691 = vpop.f32.mrb[0].mxu0
        %v692 = vadd.f32 %v593, %v691
        %v693 = vpop.f32.mrb[0].mxu0
        %v694 = vadd.f32 %v593, %v693
        %695 = vmatprep.mubr.f32.mxu0 0.0
        %696 = vmatmul.mubr.f32.gmra.mrb[0].mxu0 %v611
        %v697 = vpop.f32.mrb[0].mxu0
        %v698 = vadd.f32 %v598, %v697
        %v699 = vpop.f32.mrb[0].mxu0
        %v700 = vadd.f32 %v598, %v699
        %701 = vdwg.mxu0
        %v702 = vmax.f32 %v680, 0.0
        %v703 = vmax.f32 %v682, 0.0
        %v704 = vmax.f32 %v686, 0.0
        %v705 = vmax.f32 %v688, 0.0
        %v706 = vmax.f32 %v692, 0.0
        %v707 = vmax.f32 %v694, 0.0
        %v708 = vmax.f32 %v698, 0.0
        %v709 = vmax.f32 %v700, 0.0
        %v710 = vld [vmem:[%s5] sm:$0x1]
        %v711 = vld [vmem:[#allocation2] sm:$0x1]
        %713 = vset.pattern.permute.xlu0 0
        %714 = vperm.xlu0 %713, %v711
        %v715 = vpop.permute.xlu0 %714
        %v717 = vlaneseq
        %v718 = vshrl.u32 %v717, 7
        %v719 = vsub.s32 0, %v718
        %v720 = vrot.slane %v715, %v719
        %v722 = vsel %vm600, %v710, 0
        %724 = vmatprep.subr.mxu0 %v703
        %725 = vmatpush1.msra.mxu0 %v702
        %726 = vmatprep.subr.mxu0 %v705
        %727 = vmatpush1.msra.mxu0 %v704
        %728 = vmatprep.subr.mxu0 %v707
        %729 = vmatpush1.msra.mxu0 %v706
        %730 = vmatprep.subr.mxu0 %v709
        %731 = vmatpush1.msra.mxu0 %v708
        %732 = vmatprep.subr.mxu0 0.0
        %733 = vmatpush1.msra.mxu0 0.0
        %734 = vmatprep.subr.mxu0 0.0
        %735 = vmatpush1.msra.mxu0 0.0
        %736 = vmatprep.subr.mxu0 0.0
        %737 = vmatpush1.msra.mxu0 0.0
        %738 = vmatprep.subr.mxu0 0.0
        %739 = vmatpush1.msra.mxu0 0.0
        %740 = vmatprep.subr.mxu0 0.0
        %741 = vmatpush1.msra.mxu0 0.0
        %742 = vmatprep.subr.mxu0 0.0
        %743 = vmatpush1.msra.mxu0 0.0
        %744 = vmatprep.subr.mxu0 0.0
        %745 = vmatpush1.msra.mxu0 0.0
        %746 = vmatprep.subr.mxu0 0.0
        %747 = vmatpush1.msra.mxu0 0.0
        %748 = vmatprep.subr.mxu0 0.0
        %749 = vmatpush1.msra.mxu0 0.0
        %750 = vmatprep.subr.mxu0 0.0
        %751 = vmatpush1.msra.mxu0 0.0
        %752 = vmatprep.subr.mxu0 0.0
        %753 = vmatpush1.msra.mxu0 0.0
        %754 = vmatprep.subr.mxu0 0.0
        %755 = vmatpush1.msra.mxu0 0.0
        %756 = vmatprep.subr.mxu0 0.0
        %757 = vmatpush1.msra.mxu0 0.0
        %758 = vmatprep.subr.mxu0 0.0
        %759 = vmatpush1.msra.mxu0 0.0
        %760 = vmatprep.subr.mxu0 0.0
        %761 = vmatpush1.msra.mxu0 0.0
        %762 = vmatprep.subr.mxu0 0.0
        %763 = vmatpush1.msra.mxu0 0.0
        %764 = vmatprep.subr.mxu0 0.0
        %765 = vmatpush1.msra.mxu0 0.0
        %766 = vmatprep.subr.mxu0 0.0
        %767 = vmatpush1.msra.mxu0 0.0
        %768 = vmatprep.subr.mxu0 0.0
        %769 = vmatpush1.msra.mxu0 0.0
        %770 = vmatprep.subr.mxu0 0.0
        %771 = vmatpush1.msra.mxu0 0.0
        %772 = vmatprep.subr.mxu0 0.0
        %773 = vmatpush1.msra.mxu0 0.0
        %774 = vmatprep.subr.mxu0 0.0
        %775 = vmatpush1.msra.mxu0 0.0
        %776 = vmatprep.subr.mxu0 0.0
        %777 = vmatpush1.msra.mxu0 0.0
        %778 = vmatprep.subr.mxu0 0.0
        %779 = vmatpush1.msra.mxu0 0.0
        %780 = vmatprep.subr.mxu0 0.0
        %781 = vmatpush1.msra.mxu0 0.0
        %782 = vmatprep.subr.mxu0 0.0
        %783 = vmatpush1.msra.mxu0 0.0
        %784 = vmatprep.subr.mxu0 0.0
        %785 = vmatpush1.msra.mxu0 0.0
        %786 = vmatprep.subr.mxu0 0.0
        %787 = vmatpush1.msra.mxu0 0.0
        %788 = vmatprep.mubr.f32.mxu0 0.0
        %789 = vmatmul.mubr.f32.gmra.mrb[0].mxu0 %v722
        %v790 = vpop.f32.mrb[0].mxu0
        %v791 = vadd.f32 %v720, %v790
        %v792 = vpop.f32.mrb[0].mxu0
        %v793 = vadd.f32 %v720, %v792
        %794 = vdwg.mxu0
        %v797 = vcombine.low %v791, %v793
        %v799 = vunpack.c.l.s4 1966171168
        %v800 = vunpack.c.0.s8 %v799
        %v801 = vlaneseq
        %v802 = vshrl.u32 %v801, 7
        %v803 = vsub.s32 %v800, %v802
        %v804 = vrot.slane %v797, %v803
        %v806 = vunpack.c.l.s4 1966171168
        %v807 = vunpack.c.0.s8 %v806
        %v808 = vlaneseq
        %v809 = vshrl.u32 %v808, 7
        %v810 = vsub.s32 %v807, %v809
        %v811 = vrot.slane %v804, %v810
        %v813 = vlaneseq
        %vm814 = vcmp.ge.s32.totalorder %v813, 0
        %vm815 = vcmp.lt.s32.totalorder %v813, 256
        %vm816 = vmand %vm814, %vm815
        %817 = vst.msk [vmem:[%s286] sm:$0x3] %vm816, %v811
        %s818 = sand.u32 %s183, 1
        %s819 = scalar_lea.sflag [#allocation4], %s818
        %s820 = sand.u32 %s183, 1
        %s821 = smul.addr %s820, 2
        %s822 = scalar_lea.vmem [#allocation3], %s821
        // Predicated region
        $region49: #{tpu_custom_call.1} parent=47 // pred_check
          %p823 = pneg %p193
        $region50: #{tpu_custom_call.1} parent=47 // pred_check_branch
          %825 = sbr.rel (%p823) target = $region52
        $region51: #{tpu_custom_call.1} parent=47 // pred_region
          %s826 = smul.u32 2, %s23
          %s827 = ssub.s32 5, %s826
          %p828 = scmp.lt.s32.totalorder %s827, 2
          %s829 = scalar_select %p828, %s827, 2
          %s830 = smul.u32 16, %s829
          %s832 = ssub.s32 32, %s830
          %833 = vsyncadd %s819, %s832
          %p834 = scmp.ne.s32.totalorder 0, %s830
          %s835 = smul.addr %s826, 16
          %s836 = scalar_lea.hbm %s7, %s835
          %s837 = sshll.u32 %s829, 4
          %s838 = sshll.u32 %s822, 4
          %s839 = int_to_ptr.vmem [resolvable:$true] %s838
          %841 = dma.vmem_to_hbm [thread:$0]  (%p834), %s839, %s837, %s836, %s819
        $region52: #{tpu_custom_call.1} parent=47 // pred_fallthru
          _
      $region48: #{tpu_custom_call.1} parent=5 // pred_fallthru
        _
      %p842 = scmp.le.s32.totalorder 2, %s18
      // Predicated region
      $region53: #{tpu_custom_call.1} parent=5 // pred_check
        %p843 = pneg %p842
      $region54: #{tpu_custom_call.1} parent=5 // pred_check_branch
        %845 = sbr.rel (%p843) target = $region56
      $region55: #{tpu_custom_call.1} parent=5 // pred_region
        %s846 = ssub.s32 %s18, 2
        // Predicated region
        $region57: #{tpu_custom_call.1} parent=55 // pred_check
          %p847 = pneg %p199
        $region58: #{tpu_custom_call.1} parent=55 // pred_check_branch
          %849 = sbr.rel (%p847) target = $region60
        $region59: #{tpu_custom_call.1} parent=55 // pred_region
          %s850 = sand.u32 %s184, 1
          %s851 = scalar_lea.sflag [#allocation4], %s850
          %s852 = sand.u32 %s184, 1
          %s853 = smul.addr %s852, 2
          %s854 = scalar_lea.vmem [#allocation3], %s853
          %855 = dma.done %s851, 32
        $region60: #{tpu_custom_call.1} parent=55 // pred_fallthru
          _
      $region56: #{tpu_custom_call.1} parent=5 // pred_fallthru
        _
    $region6: #{tpu_custom_call.1} parent=1 // loop_footer
      %s22 = sadd.s32 1, %s18
    $region7: #{tpu_custom_call.1} parent=1 // loop_footer_branch
      %17 = sbr.rel target = $region3
    $region8: #{tpu_custom_call.1} parent=1 // loop_exit
      _
    %856 = vsyncpa [#allocation4], 1
    %s857 = scalar_lea.sflag [#allocation4], 1
    %858 = vsyncpa %s857, 1

</llo_original>
